<compile_context>
chip_gen: v7x
topology: tpu7x:2x2x1
jax: 0.10.0
libtpu: 0.0.40
codegen_flags: <defaults>
</compile_context>

<pallas_src>
import jax
import jax.numpy as jnp
from jax.experimental import pallas as pl
from jax.experimental.pallas import tpu as pltpu


def _attention_kernel(x_ref, wbd_ref, e_ref, g_ref, b_ref, o_ref):
    # x_ref:  (TB, S*F)  lane-dense streamed block
    # wbd_ref:(S*F, S)   block-diagonal copy of `weight` (shared)
    # e_ref:  (S, S*F)   0/1 broadcast matrix (shared)
    # g_ref:  (S*F, F)   0/1 sum-over-step matrix (shared)
    # b_ref:  (1, S)     bias (shared)
    # o_ref:  (TB, F)
    x = x_ref[...].astype(jnp.float32)                                       # (TB, S*F)

    # eij[b, s] = sum_f x[b, s, f] * w[f]  -> single MXU matmul, K = S*F.
    eij = jnp.dot(x, wbd_ref[...], preferred_element_type=jnp.float32)       # (TB, S)
    eij = eij + b_ref[...]
    a = jnp.exp(jnp.tanh(eij))                                               # (TB, S)  EUP

    denom = jnp.sum(a, axis=1, keepdims=True) + 1e-10                        # (TB, 1)

    # Broadcast a over each F-segment (MXU), one VALU multiply on the streamed
    # block, then contract the step axis (MXU).
    a_exp = jnp.dot(a, e_ref[...], preferred_element_type=jnp.float32)       # (TB, S*F)
    acc = jnp.dot(x * a_exp, g_ref[...], preferred_element_type=jnp.float32) # (TB, F)

    inv = pl.reciprocal(denom, approx=True)        # EUP slot (cheap)
    inv = inv * (2.0 - denom * inv)                # one Newton step -> ~f32 exact
    o_ref[...] = (acc * inv).astype(o_ref.dtype)


def _round_up(n, m):
    return ((n + m - 1) // m) * m


def attention_forward(x, weight, bias, *, max_tb=4096):
    """x: (B, S, F), weight: (F, 1), bias: (S,) -> (B, F)."""
    B, S, F = x.shape
    assert weight.shape == (F, 1)
    assert bias.shape == (S,)
    SF = S * F
    itemsize = jnp.dtype(x.dtype).itemsize

    # ---- Generation-aware VMEM budget --------------------------------------
    try:
        vmem_cap = int(pltpu.get_tpu_info().vmem_capacity_bytes)
    except Exception:
        vmem_cap = 64 * 1024 * 1024            # conservative (v7x per-TC VMEM)
    vmem_limit = int(min(vmem_cap * 3 // 4, 96 * 1024 * 1024))
    tile_budget = vmem_cap // 2

    # Padded (lane/sublane) per-batch-row footprint:
    #   2x double-buffered x block   + ~3 f32 in-kernel temporaries of the
    #   x block (f32 copy, a_exp, x*a_exp) + 2x double-buffered output block.
    lane_x = _round_up(SF, 128)
    lane_o = _round_up(F, 128)
    per_row = 2 * lane_x * itemsize + 3 * lane_x * 4 + 2 * lane_o * 4
    fixed = 4 * 1024 * 1024                    # shared W_bd/E/G/bias + scratch margin
    tb_vmem = max(8, ((tile_budget - fixed) // per_row) // 8 * 8)
    # Keep >= ~8 grid steps at large B so the "parallel" axis shards across the
    # 2 TensorCores on v7x (no effect on single-TC v5e/v6e).
    tb_par = max(8, _round_up(pl.cdiv(B, 8), 8))
    TB = int(min(max_tb, tb_vmem, tb_par, _round_up(B, 8)))
    grid = (pl.cdiv(B, TB),)
    # TODO(synk): if a single (TB, S*F) row-slab ever exceeds the VMEM budget
    # (huge S*F), add an "arbitrary" step/feature grid axis with an online
    # accumulator.

    # ---- Lane-dense input + small shared constant matrices ------------------
    f32 = jnp.float32
    x_in = x.reshape(B, SF)                                       # free reshape
    w_bd = jnp.kron(jnp.eye(S, dtype=f32), weight.astype(f32))    # (S*F, S)
    e_mat = jnp.kron(jnp.eye(S, dtype=f32), jnp.ones((1, F), f32))  # (S, S*F)
    g_mat = jnp.tile(jnp.eye(F, dtype=f32), (S, 1))               # (S*F, F)
    b_in = bias.reshape(1, S).astype(f32)

    out = pl.pallas_call(
        _attention_kernel,
        out_shape=jax.ShapeDtypeStruct((B, F), x.dtype),
        grid_spec=pltpu.PrefetchScalarGridSpec(
            num_scalar_prefetch=0,
            grid=grid,
            in_specs=[
                pl.BlockSpec((TB, SF), lambda b: (b, 0)),   # x (lane-dense stream)
                pl.BlockSpec((SF, S), lambda b: (0, 0)),    # W_blockdiag (shared)
                pl.BlockSpec((S, SF), lambda b: (0, 0)),    # E (shared)
                pl.BlockSpec((SF, F), lambda b: (0, 0)),    # G (shared)
                pl.BlockSpec((1, S), lambda b: (0, 0)),     # bias (shared)
            ],
            out_specs=pl.BlockSpec((TB, F), lambda b: (b, 0)),
        ),
        compiler_params=pltpu.CompilerParams(
            dimension_semantics=("parallel",),              # 2-TC sharding on v7x
            vmem_limit_bytes=vmem_limit,
        ),
        cost_estimate=pl.CostEstimate(
            flops=2 * B * SF * (2 * S + F) + B * SF,
            transcendentals=2 * B * S + B,
            bytes_accessed=itemsize * (B * SF + B * F)
            + 4 * (2 * SF * S + SF * F + S),
        ),
    )(x_in, w_bd, e_mat, g_mat, b_in)

    return out


def _reference(x, weight, bias):
    # Pure-JAX reference mirroring the PyTorch forward (mask=None).
    B, S, F = x.shape
    eij = (x.reshape(-1, F) @ weight).reshape(B, S)
    eij = jnp.tanh(eij + bias[None, :])
    a = jnp.exp(eij)
    a = a / (jnp.sum(a, axis=1, keepdims=True) + 1e-10)
    return jnp.sum(x * a[..., None], axis=1)


if __name__ == "__main__":
    # Small shapes consistent with the module: feature_dim=32, step_dim=8, batch=2.
    B, S, F = 2, 8, 32
    key = jax.random.PRNGKey(0)
    kx, kw = jax.random.split(key)

    x = jax.random.normal(kx, (B, S, F), dtype=jnp.float32)

    # Deterministic kaiming_uniform-style init for weight (F, 1):
    # fan_in = 1 for a (F, 1) tensor -> bound = sqrt(6).
    bound = jnp.sqrt(6.0)
    weight = jax.random.uniform(kw, (F, 1), dtype=jnp.float32,
                                minval=-bound, maxval=bound)
    bias = jnp.zeros((S,), dtype=jnp.float32)   # nn.Parameter(torch.zeros(step_dim))

    out = attention_forward(x, weight, bias)
    jax.block_until_ready(out)

    ref = _reference(x, weight, bias)
    assert out.shape == (B, F)
    assert jnp.allclose(out, ref, atol=1e-4, rtol=1e-4), "mismatch vs reference"
    print("KERNEL_OK")
</pallas_src>

<mosaic_0001>
module attributes {stable_mosaic.version = 11 : i64} {
  func.func @_attention_kernel(%arg0: i32, %arg1: memref<8x256xf32, #tpu.memory_space<vmem>>, %arg2: memref<256x8xf32, #tpu.memory_space<vmem>>, %arg3: memref<8x256xf32, #tpu.memory_space<vmem>>, %arg4: memref<256x32xf32, #tpu.memory_space<vmem>>, %arg5: memref<1x8xf32, #tpu.memory_space<vmem>>, %arg6: memref<8x32xf32, #tpu.memory_space<vmem>>) attributes {dimension_semantics = [#tpu.dimension_semantics<parallel>], iteration_bounds = array<i64: 1>, scalar_prefetch = 0 : i64, scratch_operands = 0 : i64, tpu.core_type = #tpu.core_type<tc>, window_params = [{transform_indices = @transform_0, window_bounds = array<i64: 8, 256>}, {pipeline_mode = #tpu.pipeline_mode<synchronous>, transform_indices = @transform_1, window_bounds = array<i64: 256, 8>}, {pipeline_mode = #tpu.pipeline_mode<synchronous>, transform_indices = @transform_2, window_bounds = array<i64: 8, 256>}, {pipeline_mode = #tpu.pipeline_mode<synchronous>, transform_indices = @transform_3, window_bounds = array<i64: 256, 32>}, {pipeline_mode = #tpu.pipeline_mode<synchronous>, transform_indices = @transform_4, window_bounds = array<i64: 1, 8>}, {transform_indices = @transform_5, window_bounds = array<i64: 8, 32>}]} {
    %c0 = arith.constant 0 : index
    %c0_0 = arith.constant 0 : index
    %0 = vector.load %arg1[%c0, %c0_0] : memref<8x256xf32, #tpu.memory_space<vmem>>, vector<8x256xf32>
    %c0_1 = arith.constant 0 : index
    %c0_2 = arith.constant 0 : index
    %1 = vector.load %arg2[%c0_1, %c0_2] : memref<256x8xf32, #tpu.memory_space<vmem>>, vector<256x8xf32>
    %cst = arith.constant dense<0.000000e+00> : vector<8x8xf32>
    %2 = tpu.matmul %0, %1, %cst {dimension_numbers = #tpu.dot_dimension_numbers<[1], [0], [0], [1], [0, 0, 1, 1], [], []>} : vector<8x256xf32>, vector<256x8xf32>, vector<8x8xf32> -> vector<8x8xf32>
    %c0_3 = arith.constant 0 : index
    %c0_4 = arith.constant 0 : index
    %3 = vector.load %arg5[%c0_3, %c0_4] : memref<1x8xf32, #tpu.memory_space<vmem>>, vector<1x8xf32>
    %4 = vector.broadcast %3 : vector<1x8xf32> to vector<8x8xf32>
    %5 = arith.addf %2, %4 : vector<8x8xf32>
    %6 = math.tanh %5 : vector<8x8xf32>
    %7 = math.exp %6 : vector<8x8xf32>
    %cst_5 = arith.constant dense<0.000000e+00> : vector<8xf32>
    %8 = vector.multi_reduction <add>, %7, %cst_5 [1] : vector<8x8xf32> to vector<8xf32>
    %9 = vector.shape_cast %8 : vector<8xf32> to vector<8x1xf32>
    %cst_6 = arith.constant 1.000000e-10 : f32
    %10 = vector.broadcast %cst_6 : f32 to vector<8x1xf32>
    %11 = arith.addf %9, %10 : vector<8x1xf32>
    %c0_7 = arith.constant 0 : index
    %c0_8 = arith.constant 0 : index
    %12 = vector.load %arg3[%c0_7, %c0_8] : memref<8x256xf32, #tpu.memory_space<vmem>>, vector<8x256xf32>
    %cst_9 = arith.constant dense<0.000000e+00> : vector<8x256xf32>
    %13 = tpu.matmul %7, %12, %cst_9 {dimension_numbers = #tpu.dot_dimension_numbers<[1], [0], [0], [1], [0, 0, 1, 1], [], []>} : vector<8x8xf32>, vector<8x256xf32>, vector<8x256xf32> -> vector<8x256xf32>
    %14 = arith.mulf %0, %13 : vector<8x256xf32>
    %c0_10 = arith.constant 0 : index
    %c0_11 = arith.constant 0 : index
    %15 = vector.load %arg4[%c0_10, %c0_11] : memref<256x32xf32, #tpu.memory_space<vmem>>, vector<256x32xf32>
    %cst_12 = arith.constant dense<0.000000e+00> : vector<8x32xf32>
    %16 = tpu.matmul %14, %15, %cst_12 {dimension_numbers = #tpu.dot_dimension_numbers<[1], [0], [0], [1], [0, 0, 1, 1], [], []>} : vector<8x256xf32>, vector<256x32xf32>, vector<8x32xf32> -> vector<8x32xf32>
    %17 = tpu.reciprocal %11 {approx = true} : vector<8x1xf32> -> vector<8x1xf32>
    %18 = arith.mulf %11, %17 : vector<8x1xf32>
    %cst_13 = arith.constant 2.000000e+00 : f32
    %19 = vector.broadcast %cst_13 : f32 to vector<8x1xf32>
    %20 = arith.subf %19, %18 : vector<8x1xf32>
    %21 = arith.mulf %17, %20 : vector<8x1xf32>
    %22 = vector.broadcast %21 : vector<8x1xf32> to vector<8x32xf32>
    %23 = arith.mulf %16, %22 : vector<8x32xf32>
    %c0_14 = arith.constant 0 : index
    %c0_15 = arith.constant 0 : index
    %24 = vector.load %arg6[%c0_14, %c0_15] : memref<8x32xf32, #tpu.memory_space<vmem>>, vector<8x32xf32>
    tpu.vector_store %arg6[%c0_14, %c0_15], %23 {strides = array<i32>} : memref<8x32xf32, #tpu.memory_space<vmem>>, vector<8x32xf32>,
    return
  }
  func.func @transform_0(%arg0: i32) -> (i32, i32) {
    %c0_i32 = arith.constant 0 : i32
    %c0_i32_0 = arith.constant 0 : i32
    return %arg0, %c0_i32 : i32, i32
  }
  func.func @transform_1(%arg0: i32) -> (i32, i32) {
    %c0_i32 = arith.constant 0 : i32
    %c0_i32_0 = arith.constant 0 : i32
    %c0_i32_1 = arith.constant 0 : i32
    return %c0_i32, %c0_i32_0 : i32, i32
  }
  func.func @transform_2(%arg0: i32) -> (i32, i32) {
    %c0_i32 = arith.constant 0 : i32
    %c0_i32_0 = arith.constant 0 : i32
    %c0_i32_1 = arith.constant 0 : i32
    return %c0_i32, %c0_i32_0 : i32, i32
  }
  func.func @transform_3(%arg0: i32) -> (i32, i32) {
    %c0_i32 = arith.constant 0 : i32
    %c0_i32_0 = arith.constant 0 : i32
    %c0_i32_1 = arith.constant 0 : i32
    return %c0_i32, %c0_i32_0 : i32, i32
  }
  func.func @transform_4(%arg0: i32) -> (i32, i32) {
    %c0_i32 = arith.constant 0 : i32
    %c0_i32_0 = arith.constant 0 : i32
    %c0_i32_1 = arith.constant 0 : i32
    return %c0_i32, %c0_i32_0 : i32, i32
  }
  func.func @transform_5(%arg0: i32) -> (i32, i32) {
    %c0_i32 = arith.constant 0 : i32
    %c0_i32_0 = arith.constant 0 : i32
    return %arg0, %c0_i32 : i32, i32
  }
}

</mosaic_0001>

<llo_original>
// kernel: tpu_custom_call.1
$region0: #{tpu_custom_call.1}
  #allocation0 [shape = 'u32[]', space=smem, size = 0x4, offset = 0x4, fixed_abs, tag = 'smem constant byte address 0x4 - core index']
  #allocation1 [shape = 'u32[144,128]{1,0:T(1,128)}', space=vmem, size = 0x12000, scoped, tag = 'internal scratch']
  %s0 = inlined_call_operand.vmem [shape: f32[2,256], index: 0, kind: input, shape index: {}]
  %s1 = inlined_call_operand.vmem [shape: f32[256,8], index: 1, kind: input, shape index: {}]
  %s2 = inlined_call_operand.vmem [shape: f32[8,256], index: 2, kind: input, shape index: {}]
  %s3 = inlined_call_operand.vmem [shape: f32[256,32], index: 3, kind: input, shape index: {}]
  %s4 = inlined_call_operand.vmem [shape: f32[1,8], index: 4, kind: input, shape index: {}]
  %s5 = inlined_call_operand.hbm [shape: f32[2,32], index: 5, kind: output, shape index: {}]
  %s6 = sld [smem:[#allocation0]]
  $region30: #{tpu_custom_call.1} parent=0
    _
  %s8 = ssub.s32 1, %s6
  %s9 = scalar_select 0, %s8, %s6
  $region1: #{tpu_custom_call.1} parent=0
    #allocation2 [shape = 'u8[4096]{0}', space=vmem, size = 0x1000, scoped, tag = 'output window, operand 0, single buffered']
    #allocation3 [shape = 's32[1]{0}', space=sflag, size = 0x4, scoped, tag = 'scoped memory for tpu_custom_call.1']
    %10 = vsyncpa [#allocation3], 0
    // Predicated region
    $region2: #{tpu_custom_call.1} parent=1 // pred_check
      _
    $region3: #{tpu_custom_call.1} parent=1 // pred_check_branch
      %12 = sbr.rel (0) target = $region5
    $region4: #{tpu_custom_call.1} parent=1 // pred_region
      _
    $region5: #{tpu_custom_call.1} parent=1 // pred_fallthru
      _
    // Predicated region
    $region6: #{tpu_custom_call.1} parent=1 // pred_check
      _
    $region7: #{tpu_custom_call.1} parent=1 // pred_check_branch
      %14 = sbr.rel (0) target = $region9
    $region8: #{tpu_custom_call.1} parent=1 // pred_region
      _
    $region9: #{tpu_custom_call.1} parent=1 // pred_fallthru
      _
    // Predicated region
    $region10: #{tpu_custom_call.1} parent=1 // pred_check
      _
    $region11: #{tpu_custom_call.1} parent=1 // pred_check_branch
      %16 = sbr.rel (0) target = $region13
    $region12: #{tpu_custom_call.1} parent=1 // pred_region
      _
    $region13: #{tpu_custom_call.1} parent=1 // pred_fallthru
      _
    // Predicated region
    $region14: #{tpu_custom_call.1} parent=1 // pred_check
      _
    $region15: #{tpu_custom_call.1} parent=1 // pred_check_branch
      %18 = sbr.rel (0) target = $region17
    $region16: #{tpu_custom_call.1} parent=1 // pred_region
      _
    $region17: #{tpu_custom_call.1} parent=1 // pred_fallthru
      _
    // Predicated region
    $region18: #{tpu_custom_call.1} parent=1 // pred_check
      _
    $region19: #{tpu_custom_call.1} parent=1 // pred_check_branch
      %20 = sbr.rel (0) target = $region21
    $region20: #{tpu_custom_call.1} parent=1 // pred_region
      _
    $region21: #{tpu_custom_call.1} parent=1 // pred_fallthru
      _
    %v21 = vld [vmem:[%s0] sm:$0xf]
    %v22 = vld [vmem:[%s0 + $0x4] sm:$0xf]
    %v23 = vld [vmem:[%s0 + $0x8] sm:$0xf]
    %v24 = vld [vmem:[%s0 + $0xc] sm:$0xf]
    %v25 = vld [vmem:[%s1] sm:$0xff]
    %v26 = vld [vmem:[%s1 + $0x8] sm:$0xff]
    %v27 = vld [vmem:[%s1 + $0x10] sm:$0xff]
    %v28 = vld [vmem:[%s1 + $0x18] sm:$0xff]
    %v29 = vld [vmem:[%s1 + $0x20] sm:$0xff]
    %v30 = vld [vmem:[%s1 + $0x28] sm:$0xff]
    %v31 = vld [vmem:[%s1 + $0x30] sm:$0xff]
    %v32 = vld [vmem:[%s1 + $0x38] sm:$0xff]
    %v33 = vld [vmem:[%s1 + $0x40] sm:$0xff]
    %v34 = vld [vmem:[%s1 + $0x48] sm:$0xff]
    %v35 = vld [vmem:[%s1 + $0x50] sm:$0xff]
    %v36 = vld [vmem:[%s1 + $0x58] sm:$0xff]
    %v37 = vld [vmem:[%s1 + $0x60] sm:$0xff]
    %v38 = vld [vmem:[%s1 + $0x68] sm:$0xff]
    %v39 = vld [vmem:[%s1 + $0x70] sm:$0xff]
    %v40 = vld [vmem:[%s1 + $0x78] sm:$0xff]
    %v41 = vld [vmem:[%s1 + $0x80] sm:$0xff]
    %v42 = vld [vmem:[%s1 + $0x88] sm:$0xff]
    %v43 = vld [vmem:[%s1 + $0x90] sm:$0xff]
    %v44 = vld [vmem:[%s1 + $0x98] sm:$0xff]
    %v45 = vld [vmem:[%s1 + $0xa0] sm:$0xff]
    %v46 = vld [vmem:[%s1 + $0xa8] sm:$0xff]
    %v47 = vld [vmem:[%s1 + $0xb0] sm:$0xff]
    %v48 = vld [vmem:[%s1 + $0xb8] sm:$0xff]
    %v49 = vld [vmem:[%s1 + $0xc0] sm:$0xff]
    %v50 = vld [vmem:[%s1 + $0xc8] sm:$0xff]
    %v51 = vld [vmem:[%s1 + $0xd0] sm:$0xff]
    %v52 = vld [vmem:[%s1 + $0xd8] sm:$0xff]
    %v53 = vld [vmem:[%s1 + $0xe0] sm:$0xff]
    %v54 = vld [vmem:[%s1 + $0xe8] sm:$0xff]
    %v55 = vld [vmem:[%s1 + $0xf0] sm:$0xff]
    %v56 = vld [vmem:[%s1 + $0xf8] sm:$0xff]
    %v57 = vld [vmem:[%s4] sm:$0x1]
    %v59 = vlaneseq
    %v60 = vshrl.u32 %v59, 7
    %v61 = vsub.s32 0, %v60
    %v62 = vrot.slane %v57, %v61
    %v68 = vcombine.low %v21, %v22
    %v69 = vcombine.low %v23, %v24
    %v71 = vunpack.c.l.s4 1983009808
    %v72 = vunpack.c.0.s8 %v71
    %v73 = vlaneseq
    %v74 = vshrl.u32 %v73, 7
    %v75 = vsub.s32 %v72, %v74
    %v76 = vrot.slane %v68, %v75
    %v78 = vunpack.c.l.s4 1983009808
    %v79 = vunpack.c.0.s8 %v78
    %v80 = vlaneseq
    %v81 = vshrl.u32 %v80, 7
    %v82 = vsub.s32 %v79, %v81
    %v83 = vrot.slane %v69, %v82
    %v84 = vcombine.low %v76, %v83
    %v85 = vcombine.high %v76, %v83
    %88 = vmatprep.subr.mxu0 0.0
    %89 = vmatpush1.msra.mxu0 %v25
    %90 = vmatprep.subr.mxu0 0.0
    %91 = vmatpush1.msra.mxu0 %v26
    %92 = vmatprep.subr.mxu0 0.0
    %93 = vmatpush1.msra.mxu0 %v27
    %94 = vmatprep.subr.mxu0 0.0
    %95 = vmatpush1.msra.mxu0 %v28
    %96 = vmatprep.subr.mxu0 0.0
    %97 = vmatpush1.msra.mxu0 %v29
    %98 = vmatprep.subr.mxu0 0.0
    %99 = vmatpush1.msra.mxu0 %v30
    %100 = vmatprep.subr.mxu0 0.0
    %101 = vmatpush1.msra.mxu0 %v31
    %102 = vmatprep.subr.mxu0 0.0
    %103 = vmatpush1.msra.mxu0 %v32
    %104 = vmatprep.subr.mxu0 0.0
    %105 = vmatpush1.msra.mxu0 %v33
    %106 = vmatprep.subr.mxu0 0.0
    %107 = vmatpush1.msra.mxu0 %v34
    %108 = vmatprep.subr.mxu0 0.0
    %109 = vmatpush1.msra.mxu0 %v35
    %110 = vmatprep.subr.mxu0 0.0
    %111 = vmatpush1.msra.mxu0 %v36
    %112 = vmatprep.subr.mxu0 0.0
    %113 = vmatpush1.msra.mxu0 %v37
    %114 = vmatprep.subr.mxu0 0.0
    %115 = vmatpush1.msra.mxu0 %v38
    %116 = vmatprep.subr.mxu0 0.0
    %117 = vmatpush1.msra.mxu0 %v39
    %118 = vmatprep.subr.mxu0 0.0
    %119 = vmatpush1.msra.mxu0 %v40
    %120 = vmatprep.subr.mxu0 0.0
    %121 = vmatpush1.msra.mxu0 %v41
    %122 = vmatprep.subr.mxu0 0.0
    %123 = vmatpush1.msra.mxu0 %v42
    %124 = vmatprep.subr.mxu0 0.0
    %125 = vmatpush1.msra.mxu0 %v43
    %126 = vmatprep.subr.mxu0 0.0
    %127 = vmatpush1.msra.mxu0 %v44
    %128 = vmatprep.subr.mxu0 0.0
    %129 = vmatpush1.msra.mxu0 %v45
    %130 = vmatprep.subr.mxu0 0.0
    %131 = vmatpush1.msra.mxu0 %v46
    %132 = vmatprep.subr.mxu0 0.0
    %133 = vmatpush1.msra.mxu0 %v47
    %134 = vmatprep.subr.mxu0 0.0
    %135 = vmatpush1.msra.mxu0 %v48
    %136 = vmatprep.subr.mxu0 0.0
    %137 = vmatpush1.msra.mxu0 %v49
    %138 = vmatprep.subr.mxu0 0.0
    %139 = vmatpush1.msra.mxu0 %v50
    %140 = vmatprep.subr.mxu0 0.0
    %141 = vmatpush1.msra.mxu0 %v51
    %142 = vmatprep.subr.mxu0 0.0
    %143 = vmatpush1.msra.mxu0 %v52
    %144 = vmatprep.subr.mxu0 0.0
    %145 = vmatpush1.msra.mxu0 %v53
    %146 = vmatprep.subr.mxu0 0.0
    %147 = vmatpush1.msra.mxu0 %v54
    %148 = vmatprep.subr.mxu0 0.0
    %149 = vmatpush1.msra.mxu0 %v55
    %150 = vmatprep.subr.mxu0 0.0
    %151 = vmatpush1.msra.mxu0 %v56
    %152 = vmatprep.mubr.f32.mxu0 %v85
    %153 = vmatmul.mubr.f32.gmra.mrb[0].mxu0 %v84
    %v154 = vpop.f32.mrb[0].mxu0
    %v155 = vadd.f32 %v62, %v154
    %v156 = vpop.f32.mrb[0].mxu0
    %157 = vdwg.mxu0
    %v158 = vtanh.pop %v155
    %v159 = vmul.f32 %v158, 1.442695
    %v160 = vpow.pop %v159
    %vm161 = vcmask 64512
    %v162 = vsel %vm161, %v160, 0.0
    %163 = vadd.xlane.f32.xlu0 %v162
    %v164 = vpop.xlane.xlu0 %163
    %v165 = vadd.f32 %v164, 1e-10
    %v166 = vld [vmem:[%s2] sm:$0xff]
    %v167 = vld [vmem:[%s2 + $0x8] sm:$0xff]
    %v169 = vsel %vm161, %v160, 0
    %171 = vmatprep.subr.mxu0 %v167
    %172 = vmatpush1.msra.mxu0 %v166
    %173 = vmatprep.subr.mxu0 0.0
    %174 = vmatpush1.msra.mxu0 0.0
    %175 = vmatprep.subr.mxu0 0.0
    %176 = vmatpush1.msra.mxu0 0.0
    %177 = vmatprep.subr.mxu0 0.0
    %178 = vmatpush1.msra.mxu0 0.0
    %179 = vmatprep.subr.mxu0 0.0
    %180 = vmatpush1.msra.mxu0 0.0
    %181 = vmatprep.subr.mxu0 0.0
    %182 = vmatpush1.msra.mxu0 0.0
    %183 = vmatprep.subr.mxu0 0.0
    %184 = vmatpush1.msra.mxu0 0.0
    %185 = vmatprep.subr.mxu0 0.0
    %186 = vmatpush1.msra.mxu0 0.0
    %187 = vmatprep.subr.mxu0 0.0
    %188 = vmatpush1.msra.mxu0 0.0
    %189 = vmatprep.subr.mxu0 0.0
    %190 = vmatpush1.msra.mxu0 0.0
    %191 = vmatprep.subr.mxu0 0.0
    %192 = vmatpush1.msra.mxu0 0.0
    %193 = vmatprep.subr.mxu0 0.0
    %194 = vmatpush1.msra.mxu0 0.0
    %195 = vmatprep.subr.mxu0 0.0
    %196 = vmatpush1.msra.mxu0 0.0
    %197 = vmatprep.subr.mxu0 0.0
    %198 = vmatpush1.msra.mxu0 0.0
    %199 = vmatprep.subr.mxu0 0.0
    %200 = vmatpush1.msra.mxu0 0.0
    %201 = vmatprep.subr.mxu0 0.0
    %202 = vmatpush1.msra.mxu0 0.0
    %203 = vmatprep.subr.mxu0 0.0
    %204 = vmatpush1.msra.mxu0 0.0
    %205 = vmatprep.subr.mxu0 0.0
    %206 = vmatpush1.msra.mxu0 0.0
    %207 = vmatprep.subr.mxu0 0.0
    %208 = vmatpush1.msra.mxu0 0.0
    %209 = vmatprep.subr.mxu0 0.0
    %210 = vmatpush1.msra.mxu0 0.0
    %211 = vmatprep.subr.mxu0 0.0
    %212 = vmatpush1.msra.mxu0 0.0
    %213 = vmatprep.subr.mxu0 0.0
    %214 = vmatpush1.msra.mxu0 0.0
    %215 = vmatprep.subr.mxu0 0.0
    %216 = vmatpush1.msra.mxu0 0.0
    %217 = vmatprep.subr.mxu0 0.0
    %218 = vmatpush1.msra.mxu0 0.0
    %219 = vmatprep.subr.mxu0 0.0
    %220 = vmatpush1.msra.mxu0 0.0
    %221 = vmatprep.subr.mxu0 0.0
    %222 = vmatpush1.msra.mxu0 0.0
    %223 = vmatprep.subr.mxu0 0.0
    %224 = vmatpush1.msra.mxu0 0.0
    %225 = vmatprep.subr.mxu0 0.0
    %226 = vmatpush1.msra.mxu0 0.0
    %227 = vmatprep.subr.mxu0 0.0
    %228 = vmatpush1.msra.mxu0 0.0
    %229 = vmatprep.subr.mxu0 0.0
    %230 = vmatpush1.msra.mxu0 0.0
    %231 = vmatprep.subr.mxu0 0.0
    %232 = vmatpush1.msra.mxu0 0.0
    %233 = vmatprep.subr.mxu0 0.0
    %234 = vmatpush1.msra.mxu0 0.0
    %235 = vmatprep.mubr.f32.mxu0 0.0
    %236 = vmatmul.mubr.f32.gmra.mrb[0].mxu0 %v169
    %v237 = vpop.f32.mrb[0].mxu0
    %v238 = vadd.f32 0.0, %v237
    %v239 = vpop.f32.mrb[0].mxu0
    %v240 = vadd.f32 0.0, %v239
    %241 = vdwg.mxu0
    %v244 = vcombine.low %v238, %v240
    %v245 = vcombine.high %v238, %v240
    %v247 = vunpack.c.l.s4 1983009808
    %v248 = vunpack.c.0.s8 %v247
    %v249 = vlaneseq
    %v250 = vshrl.u32 %v249, 7
    %v251 = vsub.s32 %v248, %v250
    %v252 = vrot.slane %v244, %v251
    %v254 = vunpack.c.l.s4 1983009808
    %v255 = vunpack.c.0.s8 %v254
    %v256 = vlaneseq
    %v257 = vshrl.u32 %v256, 7
    %v258 = vsub.s32 %v255, %v257
    %v259 = vrot.slane %v245, %v258
    %v260 = vcombine.high %v252, %v252
    %v261 = vcombine.high %v259, %v259
    %v266 = vmul.f32 %v21, %v252
    %v267 = vmul.f32 %v22, %v260
    %v268 = vmul.f32 %v23, %v259
    %v269 = vmul.f32 %v24, %v261
    %v270 = vld [vmem:[%s3] sm:$0xff]
    %v271 = vld [vmem:[%s3 + $0x8] sm:$0xff]
    %v272 = vld [vmem:[%s3 + $0x10] sm:$0xff]
    %v273 = vld [vmem:[%s3 + $0x18] sm:$0xff]
    %v274 = vld [vmem:[%s3 + $0x20] sm:$0xff]
    %v275 = vld [vmem:[%s3 + $0x28] sm:$0xff]
    %v276 = vld [vmem:[%s3 + $0x30] sm:$0xff]
    %v277 = vld [vmem:[%s3 + $0x38] sm:$0xff]
    %v278 = vld [vmem:[%s3 + $0x40] sm:$0xff]
    %v279 = vld [vmem:[%s3 + $0x48] sm:$0xff]
    %v280 = vld [vmem:[%s3 + $0x50] sm:$0xff]
    %v281 = vld [vmem:[%s3 + $0x58] sm:$0xff]
    %v282 = vld [vmem:[%s3 + $0x60] sm:$0xff]
    %v283 = vld [vmem:[%s3 + $0x68] sm:$0xff]
    %v284 = vld [vmem:[%s3 + $0x70] sm:$0xff]
    %v285 = vld [vmem:[%s3 + $0x78] sm:$0xff]
    %v286 = vld [vmem:[%s3 + $0x80] sm:$0xff]
    %v287 = vld [vmem:[%s3 + $0x88] sm:$0xff]
    %v288 = vld [vmem:[%s3 + $0x90] sm:$0xff]
    %v289 = vld [vmem:[%s3 + $0x98] sm:$0xff]
    %v290 = vld [vmem:[%s3 + $0xa0] sm:$0xff]
    %v291 = vld [vmem:[%s3 + $0xa8] sm:$0xff]
    %v292 = vld [vmem:[%s3 + $0xb0] sm:$0xff]
    %v293 = vld [vmem:[%s3 + $0xb8] sm:$0xff]
    %v294 = vld [vmem:[%s3 + $0xc0] sm:$0xff]
    %v295 = vld [vmem:[%s3 + $0xc8] sm:$0xff]
    %v296 = vld [vmem:[%s3 + $0xd0] sm:$0xff]
    %v297 = vld [vmem:[%s3 + $0xd8] sm:$0xff]
    %v298 = vld [vmem:[%s3 + $0xe0] sm:$0xff]
    %v299 = vld [vmem:[%s3 + $0xe8] sm:$0xff]
    %v300 = vld [vmem:[%s3 + $0xf0] sm:$0xff]
    %v301 = vld [vmem:[%s3 + $0xf8] sm:$0xff]
    %v306 = vcombine.low %v266, %v267
    %v307 = vcombine.low %v268, %v269
    %v309 = vunpack.c.l.s4 1983009808
    %v310 = vunpack.c.0.s8 %v309
    %v311 = vlaneseq
    %v312 = vshrl.u32 %v311, 7
    %v313 = vsub.s32 %v310, %v312
    %v314 = vrot.slane %v306, %v313
    %v316 = vunpack.c.l.s4 1983009808
    %v317 = vunpack.c.0.s8 %v316
    %v318 = vlaneseq
    %v319 = vshrl.u32 %v318, 7
    %v320 = vsub.s32 %v317, %v319
    %v321 = vrot.slane %v307, %v320
    %v322 = vcombine.low %v314, %v321
    %v323 = vcombine.high %v314, %v321
    %326 = vmatprep.subr.mxu0 0.0
    %327 = vmatpush1.msra.mxu0 %v270
    %328 = vmatprep.subr.mxu0 0.0
    %329 = vmatpush1.msra.mxu0 %v271
    %330 = vmatprep.subr.mxu0 0.0
    %331 = vmatpush1.msra.mxu0 %v272
    %332 = vmatprep.subr.mxu0 0.0
    %333 = vmatpush1.msra.mxu0 %v273
    %334 = vmatprep.subr.mxu0 0.0
    %335 = vmatpush1.msra.mxu0 %v274
    %336 = vmatprep.subr.mxu0 0.0
    %337 = vmatpush1.msra.mxu0 %v275
    %338 = vmatprep.subr.mxu0 0.0
    %339 = vmatpush1.msra.mxu0 %v276
    %340 = vmatprep.subr.mxu0 0.0
    %341 = vmatpush1.msra.mxu0 %v277
    %342 = vmatprep.subr.mxu0 0.0
    %343 = vmatpush1.msra.mxu0 %v278
    %344 = vmatprep.subr.mxu0 0.0
    %345 = vmatpush1.msra.mxu0 %v279
    %346 = vmatprep.subr.mxu0 0.0
    %347 = vmatpush1.msra.mxu0 %v280
    %348 = vmatprep.subr.mxu0 0.0
    %349 = vmatpush1.msra.mxu0 %v281
    %350 = vmatprep.subr.mxu0 0.0
    %351 = vmatpush1.msra.mxu0 %v282
    %352 = vmatprep.subr.mxu0 0.0
    %353 = vmatpush1.msra.mxu0 %v283
    %354 = vmatprep.subr.mxu0 0.0
    %355 = vmatpush1.msra.mxu0 %v284
    %356 = vmatprep.subr.mxu0 0.0
    %357 = vmatpush1.msra.mxu0 %v285
    %358 = vmatprep.subr.mxu0 0.0
    %359 = vmatpush1.msra.mxu0 %v286
    %360 = vmatprep.subr.mxu0 0.0
    %361 = vmatpush1.msra.mxu0 %v287
    %362 = vmatprep.subr.mxu0 0.0
    %363 = vmatpush1.msra.mxu0 %v288
    %364 = vmatprep.subr.mxu0 0.0
    %365 = vmatpush1.msra.mxu0 %v289
    %366 = vmatprep.subr.mxu0 0.0
    %367 = vmatpush1.msra.mxu0 %v290
    %368 = vmatprep.subr.mxu0 0.0
    %369 = vmatpush1.msra.mxu0 %v291
    %370 = vmatprep.subr.mxu0 0.0
    %371 = vmatpush1.msra.mxu0 %v292
    %372 = vmatprep.subr.mxu0 0.0
    %373 = vmatpush1.msra.mxu0 %v293
    %374 = vmatprep.subr.mxu0 0.0
    %375 = vmatpush1.msra.mxu0 %v294
    %376 = vmatprep.subr.mxu0 0.0
    %377 = vmatpush1.msra.mxu0 %v295
    %378 = vmatprep.subr.mxu0 0.0
    %379 = vmatpush1.msra.mxu0 %v296
    %380 = vmatprep.subr.mxu0 0.0
    %381 = vmatpush1.msra.mxu0 %v297
    %382 = vmatprep.subr.mxu0 0.0
    %383 = vmatpush1.msra.mxu0 %v298
    %384 = vmatprep.subr.mxu0 0.0
    %385 = vmatpush1.msra.mxu0 %v299
    %386 = vmatprep.subr.mxu0 0.0
    %387 = vmatpush1.msra.mxu0 %v300
    %388 = vmatprep.subr.mxu0 0.0
    %389 = vmatpush1.msra.mxu0 %v301
    %390 = vmatprep.mubr.f32.mxu0 %v323
    %391 = vmatmul.mubr.f32.gmra.mrb[0].mxu0 %v322
    %v392 = vpop.f32.mrb[0].mxu0
    %v393 = vadd.f32 0.0, %v392
    %v394 = vpop.f32.mrb[0].mxu0
    %395 = vdwg.mxu0
    %v396 = vrcp.pop %v165
    %v397 = vmul.f32 %v165, %v396
    %v398 = vsub.f32 2.0, %v397
    %v399 = vmul.f32 %v396, %v398
    %v400 = vmul.f32 %v393, %v399
    %vm401 = vcmask 261120
    %402 = vst.msk [vmem:[#allocation2] sm:$0xff] %vm401, %v400
    // Predicated region
    $region22: #{tpu_custom_call.1} parent=1 // pred_check
      _
    $region23: #{tpu_custom_call.1} parent=1 // pred_check_branch
      %404 = sbr.rel (0) target = $region25
    $region24: #{tpu_custom_call.1} parent=1 // pred_region
      %s406 = ssub.s32 128, 32
      %407 = vsyncadd [#allocation3], %s406
      %s408 = sshll.u32 [#allocation2], 4
      %s409 = int_to_ptr.vmem [resolvable:$true] %s408
      %414 = dma.vmem_to_hbm [thread:$0]  %s409, 32, %s5, [#allocation3], 32, 32, 2
    $region25: #{tpu_custom_call.1} parent=1 // pred_fallthru
      _
    // Predicated region
    $region26: #{tpu_custom_call.1} parent=1 // pred_check
      _
    $region27: #{tpu_custom_call.1} parent=1 // pred_check_branch
      %416 = sbr.rel (0) target = $region29
    $region28: #{tpu_custom_call.1} parent=1 // pred_region
      %417 = dma.done [#allocation3], 128
    $region29: #{tpu_custom_call.1} parent=1 // pred_fallthru
      _
    %418 = vsyncpa [#allocation3], 1

</llo_original>
